<compile_context>
chip_gen: v5e
topology: v5e:2x2
jax: 0.10.0
libtpu: 0.0.40
codegen_flags: <defaults>
</compile_context>

<pallas_src>
from functools import partial

import jax
import jax.numpy as jnp
from jax.experimental import pallas as pl
from jax.experimental.pallas import tpu as pltpu


def _contrastive_kernel(f_ref, pos_row_ref, pos_col_ref, loss_ref, *,
                        temperature, matmul_dtype):
    inv_t = 1.0 / temperature

    f = f_ref[...]                                        # (Bblk, N, D) f32

    # L2-normalize along D (lane axis); matches F.normalize(p=2, eps=1e-12).
    sq = jnp.sum(f * f, axis=2, keepdims=True)            # (Bblk, N, 1)
    fn = f * jax.lax.rsqrt(jnp.maximum(sq, 1e-24))        # = f / max(||f||, 1e-12)

    fm = fn.astype(matmul_dtype)                          # MXU operands
    g = fm.astype(jnp.float32)                            # f32 view of operands

    # Position-equality mask (diag included, == 1); 0/1 is exact in bf16.
    # (bool -> f32 -> matmul_dtype keeps a known-good conversion path.)
    mask = (pos_col_ref[...] == pos_row_ref[...])
    mask = mask.astype(jnp.float32).astype(matmul_dtype)  # (Bblk, N, N)

    # psum_i = sum_{j: pos_j == pos_i} fn_j  — one MXU matmul per batch elem.
    psum = jnp.einsum("bij,bjd->bid", mask, fm,
                      preferred_element_type=jnp.float32)  # (Bblk, N, D) f32

    # colsum_d = sum_j fn_jd over all patches (row-sum of the gram via matvec).
    colsum = jnp.sum(g, axis=1, keepdims=True)             # (Bblk, 1, D)

    # x = neg_s - pos_s = all_total - 2*pos_total + diag, fused into a single
    # O(N*D) elementwise multiply + lane reduction (no N^2 temporaries).
    x = jnp.sum(g * (colsum - 2.0 * psum + g), axis=2) * inv_t   # (Bblk, N)

    # loss = -log(exp(p)/(exp(p)+exp(n))) = softplus(n - p), stable form.
    loss = jnp.maximum(x, 0.0) + jnp.log(1.0 + jnp.exp(-jnp.abs(x)))

    loss_ref[0] = loss                                     # (Bblk, N) lane-dense


def _round_up(x, m):
    return -(-x // m) * m


def _vmem_limit_bytes():
    """3/4 of physical VMEM: ~48 MiB on v7x, ~96 MiB on v5e/v6e."""
    try:
        cap = int(pltpu.get_tpu_info().vmem_capacity_bytes)
    except Exception:
        cap = 64 * 1024 * 1024
    return max(16 * 1024 * 1024, (cap * 3) // 4)


def _per_elem_vmem_bytes(N, D, mm_bytes):
    """Conservative count of ALL live VMEM bytes per batch element."""
    n_sub = _round_up(N, 8)
    n_lane = _round_up(N, 128)
    d_lane = _round_up(D, 128)
    f32 = 4
    return (
        2 * n_sub * d_lane * f32          # features input block (double-buffered)
        + n_sub * d_lane * f32            # fn
        + n_sub * d_lane * mm_bytes       # fm (bf16 path; overcount is harmless on f32)
        + n_sub * d_lane * f32            # g (f32 view of fm)
        + n_sub * n_lane * mm_bytes       # position mask
        + n_sub * n_lane * mm_bytes       # possible staged/transposed matmul operand
        + n_sub * d_lane * f32            # psum (MXU result)
        + n_sub * d_lane * f32            # colsum - 2*psum + g temporary
        + n_sub * d_lane * f32            # product before lane reduction
        + 2 * n_sub * 128 * f32           # pos_col block (lane-padded, double-buffered)
        + 2 * 8 * n_lane * f32            # pos_row block (double-buffered)
        + 2 * 8 * n_lane * f32            # share of the loss output block
    )


def _pick_block_b(B, N, D, mm_bytes, budget_bytes):
    """Largest divisor of B that fits the VMEM budget and leaves >=2 grid steps."""
    per_elem = _per_elem_vmem_bytes(N, D, mm_bytes)
    cap = max(1, budget_bytes // per_elem)
    # >= 2 grid steps whenever B >= 2: megacore sharding on v7x, and the
    # BlockSpec double-buffering has steps to overlap on v5e/v6e.
    cap = min(cap, max(1, (B + 1) // 2))
    bblk = 1
    for cand in range(1, min(cap, B) + 1):
        if B % cand == 0:
            bblk = cand                   # divisor of B -> no batch padding ever
    return bblk


def contrastive_puzzle_loss(features, positions, temperature=0.07,
                            matmul_dtype=jnp.float32):
    """features: [B, N, D] float; positions: [B, N] int -> scalar loss."""
    B, N, D = features.shape
    f = features.astype(jnp.float32)
    pos_f = positions.astype(jnp.float32)   # exact for integer labels < 2^24

    vmem_limit = _vmem_limit_bytes()
    mm_bytes = jnp.dtype(matmul_dtype).itemsize
    bblk = _pick_block_b(B, N, D, mm_bytes, (vmem_limit * 2) // 3)
    num_blocks = B // bblk

    pos_row = pos_f.reshape(B, 1, N)
    pos_col = pos_f.reshape(B, N, 1)

    kernel = partial(_contrastive_kernel,
                     temperature=float(temperature),
                     matmul_dtype=matmul_dtype)

    per_row = pl.pallas_call(
        kernel,
        out_shape=jax.ShapeDtypeStruct((num_blocks, bblk, N), jnp.float32),
        grid_spec=pltpu.PrefetchScalarGridSpec(
            num_scalar_prefetch=0,
            grid=(num_blocks,),
            in_specs=[
                pl.BlockSpec((bblk, N, D), lambda b: (b, 0, 0)),
                pl.BlockSpec((bblk, 1, N), lambda b: (b, 0, 0)),
                pl.BlockSpec((bblk, N, 1), lambda b: (b, 0, 0)),
            ],
            out_specs=pl.BlockSpec((1, bblk, N), lambda b: (b, 0, 0)),
        ),
        compiler_params=pltpu.CompilerParams(
            dimension_semantics=("parallel",),
            vmem_limit_bytes=vmem_limit,
        ),
    )(f, pos_row, pos_col)

    # Final scalar mean over all (b, i) rows — matches loss.mean().
    return jnp.mean(per_row.reshape(B, N))


def _reference_loss(features, positions, temperature=0.07,
                    matmul_dtype=jnp.float32):
    """Pure-JAX reference mirroring the PyTorch forward exactly."""
    f = features.astype(jnp.float32)
    norm = jnp.sqrt(jnp.sum(f * f, axis=2, keepdims=True))
    f = f / jnp.maximum(norm, 1e-12)
    fm = f.astype(matmul_dtype)
    sim = jnp.einsum("bnd,bmd->bnm", fm, fm,
                     preferred_element_type=jnp.float32) / temperature
    pos_sim = (positions[:, :, None] == positions[:, None, :]).astype(jnp.float32)
    N = features.shape[1]
    off = 1.0 - jnp.eye(N, dtype=jnp.float32)[None]
    sim = sim * off
    pos_sim = pos_sim * off
    p = jnp.sum(sim * pos_sim, axis=2)
    n = jnp.sum(sim * (1.0 - pos_sim), axis=2)
    loss = -jnp.log(jnp.exp(p) / (jnp.exp(p) + jnp.exp(n) + 1e-8))
    return loss.mean()


if __name__ == "__main__":
    key = jax.random.PRNGKey(0)
    B, N, D = 2, 8, 32
    k_feat, k_pos = jax.random.split(key)

    features = jax.random.normal(k_feat, (B, N, D), dtype=jnp.float32)
    # Positions: a permutation of patch indices per batch element.
    positions = jnp.stack(
        [jax.random.permutation(jax.random.fold_in(k_pos, b), N) for b in range(B)]
    ).astype(jnp.int32)

    # f32 MXU-operand path — should match the PyTorch-style reference closely.
    loss = jax.block_until_ready(
        contrastive_puzzle_loss(features, positions, temperature=0.07))
    ref = _reference_loss(features, positions, temperature=0.07)
    assert jnp.allclose(loss, ref, rtol=1e-3, atol=1e-3), (loss, ref)

    # bf16 MXU-operand fast path (native MXU dtype on v5e/v6e/v7x), checked
    # against a bf16-operand reference.
    loss_bf16 = jax.block_until_ready(
        contrastive_puzzle_loss(features, positions, temperature=0.07,
                                matmul_dtype=jnp.bfloat16))
    ref_bf16 = _reference_loss(features, positions, temperature=0.07,
                               matmul_dtype=jnp.bfloat16)
    assert jnp.allclose(loss_bf16, ref_bf16, rtol=1e-2, atol=1e-2), (
        loss_bf16, ref_bf16)

    print("KERNEL_OK")
</pallas_src>

<mosaic_0001>
module attributes {stable_mosaic.version = 11 : i64} {
  func.func @_contrastive_kernel(%arg0: i32, %arg1: memref<1x8x32xf32, #tpu.memory_space<vmem>>, %arg2: memref<1x1x8xf32, #tpu.memory_space<vmem>>, %arg3: memref<1x8x1xf32, #tpu.memory_space<vmem>>, %arg4: memref<1x1x8xf32, #tpu.memory_space<vmem>>) attributes {dimension_semantics = [#tpu.dimension_semantics<parallel>], iteration_bounds = array<i64: 2>, scalar_prefetch = 0 : i64, scratch_operands = 0 : i64, tpu.core_type = #tpu.core_type<tc>, window_params = [{transform_indices = @transform_0, window_bounds = array<i64: 1, 8, 32>}, {transform_indices = @transform_1, window_bounds = array<i64: 1, 1, 8>}, {transform_indices = @transform_2, window_bounds = array<i64: 1, 8, 1>}, {transform_indices = @transform_3, window_bounds = array<i64: 1, 1, 8>}]} {
    %c0 = arith.constant 0 : index
    %c0_0 = arith.constant 0 : index
    %c0_1 = arith.constant 0 : index
    %0 = vector.load %arg1[%c0, %c0_0, %c0_1] : memref<1x8x32xf32, #tpu.memory_space<vmem>>, vector<1x8x32xf32>
    %1 = arith.mulf %0, %0 : vector<1x8x32xf32>
    %cst = arith.constant dense<0.000000e+00> : vector<1x8xf32>
    %2 = vector.multi_reduction <add>, %1, %cst [2] : vector<1x8x32xf32> to vector<1x8xf32>
    %3 = vector.shape_cast %2 : vector<1x8xf32> to vector<1x8x1xf32>
    %cst_2 = arith.constant 1.000000e-24 : f32
    %4 = vector.broadcast %cst_2 : f32 to vector<1x8x1xf32>
    %5 = arith.maximumf %3, %4 : vector<1x8x1xf32>
    %6 = math.rsqrt %5 : vector<1x8x1xf32>
    %7 = vector.broadcast %6 : vector<1x8x1xf32> to vector<1x8x32xf32>
    %8 = arith.mulf %0, %7 : vector<1x8x32xf32>
    %c0_3 = arith.constant 0 : index
    %c0_4 = arith.constant 0 : index
    %c0_5 = arith.constant 0 : index
    %9 = vector.load %arg3[%c0_3, %c0_4, %c0_5] : memref<1x8x1xf32, #tpu.memory_space<vmem>>, vector<1x8x1xf32>
    %c0_6 = arith.constant 0 : index
    %c0_7 = arith.constant 0 : index
    %c0_8 = arith.constant 0 : index
    %10 = vector.load %arg2[%c0_6, %c0_7, %c0_8] : memref<1x1x8xf32, #tpu.memory_space<vmem>>, vector<1x1x8xf32>
    %11 = vector.broadcast %9 : vector<1x8x1xf32> to vector<1x8x8xf32>
    %12 = vector.broadcast %10 : vector<1x1x8xf32> to vector<1x8x8xf32>
    %13 = arith.cmpf oeq, %11, %12 : vector<1x8x8xf32>
    %14 = arith.extui %13 : vector<1x8x8xi1> to vector<1x8x8xi32>
    %15 = arith.sitofp %14 : vector<1x8x8xi32> to vector<1x8x8xf32>
    "tpu.trace_start"() <{level = 10 : i32, message = "bij,bjd->bid"}> : () -> ()
    %cst_9 = arith.constant dense<0.000000e+00> : vector<1x8x32xf32>
    %16 = tpu.matmul %15, %8, %cst_9 {dimension_numbers = #tpu.dot_dimension_numbers<[2], [1], [1], [2], [0, 0, 0, 1, 1, 2], [0], [0]>} : vector<1x8x8xf32>, vector<1x8x32xf32>, vector<1x8x32xf32> -> vector<1x8x32xf32>
    "tpu.trace_stop"() : () -> ()
    %cst_10 = arith.constant dense<0.000000e+00> : vector<1x32xf32>
    %17 = vector.multi_reduction <add>, %8, %cst_10 [1] : vector<1x8x32xf32> to vector<1x32xf32>
    %18 = vector.shape_cast %17 : vector<1x32xf32> to vector<1x1x32xf32>
    %cst_11 = arith.constant 2.000000e+00 : f32
    %19 = vector.broadcast %cst_11 : f32 to vector<1x8x32xf32>
    %20 = arith.mulf %19, %16 : vector<1x8x32xf32>
    %21 = vector.broadcast %18 : vector<1x1x32xf32> to vector<1x8x32xf32>
    %22 = arith.subf %21, %20 : vector<1x8x32xf32>
    %23 = arith.addf %22, %8 : vector<1x8x32xf32>
    %24 = arith.mulf %8, %23 : vector<1x8x32xf32>
    %cst_12 = arith.constant dense<0.000000e+00> : vector<1x8xf32>
    %25 = vector.multi_reduction <add>, %24, %cst_12 [2] : vector<1x8x32xf32> to vector<1x8xf32>
    %cst_13 = arith.constant 14.2857141 : f32
    %26 = vector.broadcast %cst_13 : f32 to vector<1x8xf32>
    %27 = arith.mulf %25, %26 : vector<1x8xf32>
    %cst_14 = arith.constant 0.000000e+00 : f32
    %28 = vector.broadcast %cst_14 : f32 to vector<1x8xf32>
    %29 = arith.maximumf %27, %28 : vector<1x8xf32>
    %30 = math.absf %27 : vector<1x8xf32>
    %cst_15 = arith.constant 0.000000e+00 : f32
    %31 = vector.broadcast %cst_15 : f32 to vector<1x8xf32>
    %32 = arith.subf %31, %30 : vector<1x8xf32>
    %33 = math.exp %32 : vector<1x8xf32>
    %cst_16 = arith.constant 1.000000e+00 : f32
    %34 = vector.broadcast %cst_16 : f32 to vector<1x8xf32>
    %35 = arith.addf %34, %33 : vector<1x8xf32>
    %36 = math.log %35 : vector<1x8xf32>
    %37 = arith.addf %29, %36 : vector<1x8xf32>
    %c0_17 = arith.constant 0 : index
    %c0_18 = arith.constant 0 : index
    %c0_19 = arith.constant 0 : index
    %38 = vector.load %arg4[%c0_17, %c0_18, %c0_19] : memref<1x1x8xf32, #tpu.memory_space<vmem>>, vector<1x1x8xf32>
    %39 = vector.shape_cast %38 : vector<1x1x8xf32> to vector<1x8xf32>
    %40 = vector.shape_cast %37 : vector<1x8xf32> to vector<1x1x8xf32>
    tpu.vector_store %arg4[%c0_17, %c0_18, %c0_19], %40 {strides = array<i32>} : memref<1x1x8xf32, #tpu.memory_space<vmem>>, vector<1x1x8xf32>,
    return
  }
  func.func @transform_0(%arg0: i32) -> (i32, i32, i32) {
    %c0_i32 = arith.constant 0 : i32
    %c0_i32_0 = arith.constant 0 : i32
    %c0_i32_1 = arith.constant 0 : i32
    return %arg0, %c0_i32, %c0_i32_0 : i32, i32, i32
  }
  func.func @transform_1(%arg0: i32) -> (i32, i32, i32) {
    %c0_i32 = arith.constant 0 : i32
    %c0_i32_0 = arith.constant 0 : i32
    %c0_i32_1 = arith.constant 0 : i32
    return %arg0, %c0_i32, %c0_i32_0 : i32, i32, i32
  }
  func.func @transform_2(%arg0: i32) -> (i32, i32, i32) {
    %c0_i32 = arith.constant 0 : i32
    %c0_i32_0 = arith.constant 0 : i32
    %c0_i32_1 = arith.constant 0 : i32
    return %arg0, %c0_i32, %c0_i32_0 : i32, i32, i32
  }
  func.func @transform_3(%arg0: i32) -> (i32, i32, i32) {
    %c0_i32 = arith.constant 0 : i32
    %c0_i32_0 = arith.constant 0 : i32
    %c0_i32_1 = arith.constant 0 : i32
    return %arg0, %c0_i32, %c0_i32_0 : i32, i32, i32
  }
}

</mosaic_0001>

<llo_original>
// kernel: tpu_custom_call.1
$region0: #{tpu_custom_call.1}
  #allocation0 [shape = 'u32[]', space=smem, size = 0x4, offset = 0x4, fixed_abs, tag = 'smem constant byte address 0x4 - core index']
  #allocation1 [shape = 'u32[72,128]{1,0:T(1,128)}', space=vmem, size = 0x9000, scoped, tag = 'internal scratch']
  %s0 = inlined_call_operand.vmem [shape: f32[2,8,32], index: 0, kind: input, shape index: {}]
  %s1 = inlined_call_operand.vmem [shape: f32[2,1,8], index: 1, kind: input, shape index: {}]
  %s2 = inlined_call_operand.vmem [shape: f32[2,8,1], index: 2, kind: input, shape index: {}]
  %s3 = inlined_call_operand.hbm [shape: f32[2,1,8], index: 3, kind: output, shape index: {}]
  %s4 = sld [smem:[#allocation0]]
  $region45: #{tpu_custom_call.1} parent=0
    _
  %s6 = ssub.s32 1, %s4
  %s7 = scalar_select 0, %s6, %s4
  $region1: #{tpu_custom_call.1} parent=0
    #allocation2 [shape = 'u8[1024]{0}', space=vmem, size = 0x400, scoped, tag = 'output window, operand 0']
    #allocation3 [shape = 's32[2]{0}', space=sflag, size = 0x8, scoped, tag = 'scoped memory for tpu_custom_call.1']
    %8 = vsyncpa [#allocation3], 0
    %s9 = scalar_lea.sflag [#allocation3], 1
    %10 = vsyncpa %s9, 0
    loop: start=0, step=1, limit=4
    $region2: #{tpu_custom_call.1} parent=1 // loop_pre_header
      _
    $region3: #{tpu_custom_call.1} parent=1 // loop_header
      %s12 = sphi 0, %s16
      %p13 = scmp.ge.s32.totalorder %s12, 4
      %s22 = sphi 0, %s24
      %s25 = sphi 0, %s22
      %s26 = sphi 0, %s25
      %s42 = sphi 0, %s26
      %s48 = sphi 0, %s50
      %s51 = sphi 0, %s48
      %s52 = sphi 0, %s51
      %s68 = sphi 0, %s52
      %s74 = sphi 0, %s76
      %s77 = sphi 0, %s74
      %s78 = sphi 0, %s77
      %s94 = sphi 0, %s78
      %s100 = sphi 0, %s102
      %s103 = sphi 0, %s100
      %s104 = sphi 0, %s103
      %s120 = sphi 0, %s104
    $region4: #{tpu_custom_call.1} parent=1 // loop_header_branch
      %15 = sbr.rel (%p13) target = $region8
    $region5: #{tpu_custom_call.1} parent=1 // loop_body
      %s17 = ssub.s32 %s12, 1
      %s18 = ssub.s32 %s12, 2
      %s19 = sadd.s32 %s12, 1
      %s20 = ssub.s32 %s12, %s19
      %p21 = scmp.eq.s32.totalorder %s20, 0
      %s23 = sadd.s32 %s22, 1
      %s24 = scalar_select %p21, %s22, %s23
      %p27 = pneg %p21
      %p28 = scmp.eq.s32.totalorder %s12, 1
      %p29 = por %p27, %p28
      %p30 = scmp.ne.s32.totalorder %s22, %s25
      %p31 = scmp.eq.s32.totalorder %s12, 0
      %p32 = por %p30, %p31
      %p33 = scmp.ne.s32.totalorder %s22, %s25
      %p34 = scmp.eq.s32.totalorder %s17, 1
      %p35 = por %p33, %p34
      %p36 = scmp.ne.s32.totalorder %s25, %s26
      %p37 = scmp.eq.s32.totalorder %s17, 0
      %p38 = por %p36, %p37
      %p39 = scmp.ne.s32.totalorder %s25, %s26
      %p40 = scmp.eq.s32.totalorder %s18, 1
      %p41 = por %p39, %p40
      %p43 = scmp.ne.s32.totalorder %s26, %s42
      %p44 = scmp.eq.s32.totalorder %s18, 0
      %p45 = por %p43, %p44
      %s46 = ssub.s32 %s12, %s19
      %p47 = scmp.eq.s32.totalorder %s46, 0
      %s49 = sadd.s32 %s48, 1
      %s50 = scalar_select %p47, %s48, %s49
      %p53 = pneg %p47
      %p54 = scmp.eq.s32.totalorder %s12, 1
      %p55 = por %p53, %p54
      %p56 = scmp.ne.s32.totalorder %s48, %s51
      %p57 = scmp.eq.s32.totalorder %s12, 0
      %p58 = por %p56, %p57
      %p59 = scmp.ne.s32.totalorder %s48, %s51
      %p60 = scmp.eq.s32.totalorder %s17, 1
      %p61 = por %p59, %p60
      %p62 = scmp.ne.s32.totalorder %s51, %s52
      %p63 = scmp.eq.s32.totalorder %s17, 0
      %p64 = por %p62, %p63
      %p65 = scmp.ne.s32.totalorder %s51, %s52
      %p66 = scmp.eq.s32.totalorder %s18, 1
      %p67 = por %p65, %p66
      %p69 = scmp.ne.s32.totalorder %s52, %s68
      %p70 = scmp.eq.s32.totalorder %s18, 0
      %p71 = por %p69, %p70
      %s72 = ssub.s32 %s12, %s19
      %p73 = scmp.eq.s32.totalorder %s72, 0
      %s75 = sadd.s32 %s74, 1
      %s76 = scalar_select %p73, %s74, %s75
      %p79 = pneg %p73
      %p80 = scmp.eq.s32.totalorder %s12, 1
      %p81 = por %p79, %p80
      %p82 = scmp.ne.s32.totalorder %s74, %s77
      %p83 = scmp.eq.s32.totalorder %s12, 0
      %p84 = por %p82, %p83
      %p85 = scmp.ne.s32.totalorder %s74, %s77
      %p86 = scmp.eq.s32.totalorder %s17, 1
      %p87 = por %p85, %p86
      %p88 = scmp.ne.s32.totalorder %s77, %s78
      %p89 = scmp.eq.s32.totalorder %s17, 0
      %p90 = por %p88, %p89
      %p91 = scmp.ne.s32.totalorder %s77, %s78
      %p92 = scmp.eq.s32.totalorder %s18, 1
      %p93 = por %p91, %p92
      %p95 = scmp.ne.s32.totalorder %s78, %s94
      %p96 = scmp.eq.s32.totalorder %s18, 0
      %p97 = por %p95, %p96
      %s98 = ssub.s32 %s12, %s19
      %p99 = scmp.eq.s32.totalorder %s98, 0
      %s101 = sadd.s32 %s100, 1
      %s102 = scalar_select %p99, %s100, %s101
      %p105 = pneg %p99
      %p106 = scmp.eq.s32.totalorder %s12, 1
      %p107 = por %p105, %p106
      %p108 = scmp.ne.s32.totalorder %s100, %s103
      %p109 = scmp.eq.s32.totalorder %s12, 0
      %p110 = por %p108, %p109
      %p111 = scmp.ne.s32.totalorder %s100, %s103
      %p112 = scmp.eq.s32.totalorder %s17, 1
      %p113 = por %p111, %p112
      %p114 = scmp.ne.s32.totalorder %s103, %s104
      %p115 = scmp.eq.s32.totalorder %s17, 0
      %p116 = por %p114, %p115
      %p117 = scmp.ne.s32.totalorder %s103, %s104
      %p118 = scmp.eq.s32.totalorder %s18, 1
      %p119 = por %p117, %p118
      %p121 = scmp.ne.s32.totalorder %s104, %s120
      %p122 = scmp.eq.s32.totalorder %s18, 0
      %p123 = por %p121, %p122
      %p124 = scmp.le.s32.totalorder 1, %s12
      %p125 = scmp.lt.s32.totalorder %s12, 3
      %p126 = pnand %p124, %p125
      %p127 = pneg %p126
      // Predicated region
      $region9: #{tpu_custom_call.1} parent=5 // pred_check
        _
      $region10: #{tpu_custom_call.1} parent=5 // pred_check_branch
        %129 = sbr.rel (%p126) target = $region12
      $region11: #{tpu_custom_call.1} parent=5 // pred_region
        %s130 = ssub.s32 %s12, 1
      $region12: #{tpu_custom_call.1} parent=5 // pred_fallthru
        _
      %p131 = scmp.lt.s32.totalorder %s12, 2
      // Predicated region
      $region13: #{tpu_custom_call.1} parent=5 // pred_check
        %p132 = pneg %p131
      $region14: #{tpu_custom_call.1} parent=5 // pred_check_branch
        %134 = sbr.rel (%p132) target = $region16
      $region15: #{tpu_custom_call.1} parent=5 // pred_region
        // Predicated region
        $region17: #{tpu_custom_call.1} parent=15 // pred_check
          %p135 = pneg %p32
        $region18: #{tpu_custom_call.1} parent=15 // pred_check_branch
          %137 = sbr.rel (%p135) target = $region20
        $region19: #{tpu_custom_call.1} parent=15 // pred_region
          %p138 = scmp.lt.s32.totalorder %s12, 1
          %s139 = scalar_select %p138, %s12, 1
          %s140 = smul.addr %s139, 8
          %s141 = scalar_lea.vmem %s0, %s140
        $region20: #{tpu_custom_call.1} parent=15 // pred_fallthru
          _
        // Predicated region
        $region21: #{tpu_custom_call.1} parent=15 // pred_check
          %p142 = pneg %p58
        $region22: #{tpu_custom_call.1} parent=15 // pred_check_branch
          %144 = sbr.rel (%p142) target = $region24
        $region23: #{tpu_custom_call.1} parent=15 // pred_region
          %p145 = scmp.lt.s32.totalorder %s12, 1
          %s146 = scalar_select %p145, %s12, 1
          %s147 = scalar_lea.vmem %s1, %s146
        $region24: #{tpu_custom_call.1} parent=15 // pred_fallthru
          _
        // Predicated region
        $region25: #{tpu_custom_call.1} parent=15 // pred_check
          %p148 = pneg %p84
        $region26: #{tpu_custom_call.1} parent=15 // pred_check_branch
          %150 = sbr.rel (%p148) target = $region28
        $region27: #{tpu_custom_call.1} parent=15 // pred_region
          %p151 = scmp.lt.s32.totalorder %s12, 1
          %s152 = scalar_select %p151, %s12, 1
          %s153 = smul.addr %s152, 8
          %s154 = scalar_lea.vmem %s2, %s153
        $region28: #{tpu_custom_call.1} parent=15 // pred_fallthru
          _
      $region16: #{tpu_custom_call.1} parent=5 // pred_fallthru
        _
      %p155 = scmp.le.s32.totalorder 1, %s12
      %p156 = scmp.lt.s32.totalorder %s12, 3
      %p157 = pnand %p155, %p156
      %p158 = pneg %p157
      // Predicated region
      $region29: #{tpu_custom_call.1} parent=5 // pred_check
        _
      $region30: #{tpu_custom_call.1} parent=5 // pred_check_branch
        %160 = sbr.rel (%p157) target = $region32
      $region31: #{tpu_custom_call.1} parent=5 // pred_region
        %s161 = ssub.s32 %s12, 1
        %p162 = scmp.lt.s32.totalorder %s17, 1
        %s163 = scalar_select %p162, %s17, 1
        %s164 = smul.addr %s163, 8
        %s165 = scalar_lea.vmem %s0, %s164
        %p166 = pneg %p38
        %p167 = pneg %p35
        %p168 = scmp.lt.s32.totalorder %s17, 1
        %s169 = scalar_select %p168, %s17, 1
        %s170 = scalar_lea.vmem %s1, %s169
        %p171 = pneg %p64
        %p172 = pneg %p61
        %p173 = scmp.lt.s32.totalorder %s17, 1
        %s174 = scalar_select %p173, %s17, 1
        %s175 = smul.addr %s174, 8
        %s176 = scalar_lea.vmem %s2, %s175
        %p177 = pneg %p90
        %p178 = pneg %p87
        %p179 = pneg %p116
        %p180 = pneg %p113
        %s181 = sand.u32 %s103, 1
        %s182 = scalar_lea.sflag [#allocation3], %s181
        %s183 = sand.u32 %s103, 1
        %s184 = scalar_lea.vmem [#allocation2], %s183
        %p185 = scmp.lt.s32.totalorder %s17, 1
        %s186 = scalar_select %p185, %s17, 1
        %s187 = smul.addr %s186, 8
        %s188 = scalar_lea.vmem %s0, %s187
        %p189 = scmp.lt.s32.totalorder %s17, 1
        %s190 = scalar_select %p189, %s17, 1
        %s191 = scalar_lea.vmem %s1, %s190
        %p192 = scmp.lt.s32.totalorder %s17, 1
        %s193 = scalar_select %p192, %s17, 1
        %s194 = smul.addr %s193, 8
        %s195 = scalar_lea.vmem %s2, %s194
        %v196 = vld [vmem:[%s188] sm:$0xff]
        %v197 = vmul.f32 %v196, %v196
        %vm198 = vcmask 261120
        %v199 = vsel %vm198, %v197, 0.0
        %200 = vadd.xlane.f32.xlu0 %v199
        %v201 = vpop.xlane.xlu0 %200
        %v202 = vmax.f32 %v201, 1e-24
        %v203 = vrsqrt.pop %v202
        %v204 = vmul.f32 %v203, %v202
        %v205 = vmul.f32 %v204, %v203
        %v206 = vmul.f32 0.5, %v205
        %v207 = vsub.f32 1.5, %v206
        %v208 = vmul.f32 %v203, %v207
        %vm209 = vweird.f32 %v202
        %vm210 = vweird.f32 %v203
        %vm211 = vmor %vm209, %vm210
        %v212 = vsel %vm211, %v203, %v208
        %v213 = vmul.f32 %v196, %v212
        %v214 = vld [vmem:[%s195] sm:$0xff]
        %v215 = vld [vmem:[%s191] sm:$0x1]
        %217 = vset.pattern.permute.xlu0 0
        %218 = vperm.xlu0 %217, %v214
        %v219 = vpop.permute.xlu0 %218
        %v222 = vperm.slane %v215, 0
        %vm224 = vcmp.eq.f32.partialorder %v219, %v222
        %v225 = vsel %vm224, 1, 0
        %v226 = vcvt.s32.f32 %v225
        %vm227 = vcmask 64512
        %v229 = vsel %vm227, %v226, 0
        %231 = vmatpush.msra.mxu0 0.0
        %232 = vmatpush.msra.mxu0 0.0
        %233 = vmatpush.msra.mxu0 0.0
        %234 = vmatpush.msra.mxu0 0.0
        %235 = vmatpush.msra.mxu0 0.0
        %236 = vmatpush.msra.mxu0 0.0
        %237 = vmatpush.msra.mxu0 0.0
        %238 = vmatpush.msra.mxu0 0.0
        %239 = vmatpush.msra.mxu0 0.0
        %240 = vmatpush.msra.mxu0 0.0
        %241 = vmatpush.msra.mxu0 0.0
        %242 = vmatpush.msra.mxu0 0.0
        %243 = vmatpush.msra.mxu0 0.0
        %244 = vmatpush.msra.mxu0 0.0
        %245 = vmatpush.msra.mxu0 0.0
        %246 = vmatpush.msra.mxu0 %v213
        %247 = vmatmul.f32.gmra.mxu0 %v229
        %v248 = vpop.f32.mrf.mxu0
        %v249 = vadd.f32 0.0, %v248
        %250 = vdwg.mxu0
        %v251 = vsel %vm198, %v213, 0.0
        %v252 = vrot.slane %v251, 4
        %v253 = vadd.f32 %v251, %v252
        %v254 = vrot.slane %v253, 2
        %v255 = vadd.f32 %v253, %v254
        %v256 = vrot.slane %v255, 1
        %v257 = vadd.f32 %v255, %v256
        %v258 = vmul.f32 %v249, 2.0
        %v259 = vsub.f32 %v257, %v258
        %v260 = vadd.f32 %v259, %v213
        %v261 = vmul.f32 %v213, %v260
        %v262 = vsel %vm198, %v261, 0.0
        %263 = vadd.xlane.f32.xlu0 %v262
        %v264 = vpop.xlane.xlu0 %263
        %v265 = vmul.f32 %v264, 14.285714
        %v266 = vmax.f32 %v265, 0.0
        %v267 = vand.u32 2147483647, %v265
        %v268 = vsub.f32 0.0, %v267
        %v269 = vmul.f32 %v268, 1.442695
        %v270 = vpow.pop %v269
        %v271 = vadd.f32 %v270, 1.0
        %v272 = vlog2.pop %v271
        %v273 = vmul.f32 %v272, 0.6931472
        %v274 = vadd.f32 %v266, %v273
        %v276 = vlaneseq
        %v277 = vand.u32 %v276, 127
        %v278 = vperm.slane %v274, %v277
        %vm280 = vcmask 57344
        %281 = vst.msk [vmem:[%s184] sm:$0x1] %vm280, %v278
        %s282 = sand.u32 %s103, 1
        %s283 = scalar_lea.sflag [#allocation3], %s282
        %s284 = sand.u32 %s103, 1
        %s285 = scalar_lea.vmem [#allocation2], %s284
        // Predicated region
        $region33: #{tpu_custom_call.1} parent=31 // pred_check
          %p286 = pneg %p113
        $region34: #{tpu_custom_call.1} parent=31 // pred_check_branch
          %288 = sbr.rel (%p286) target = $region36
        $region35: #{tpu_custom_call.1} parent=31 // pred_region
          %290 = vsyncadd %s283, 0
          %s291 = scalar_lea.hbm %s3, %s17
          %s293 = sshll.u32 %s285, 4
          %s294 = int_to_ptr.vmem [resolvable:$true] %s293
          %s295 = sshll.u32 %s291, 4
          %s296 = int_to_ptr.hbm [resolvable:$true] %s295
          %298 = dma.vmem_to_hbm [thread:$0]  %s294, 16, %s296, %s283
        $region36: #{tpu_custom_call.1} parent=31 // pred_fallthru
          _
      $region32: #{tpu_custom_call.1} parent=5 // pred_fallthru
        _
      %p299 = scmp.le.s32.totalorder 2, %s12
      // Predicated region
      $region37: #{tpu_custom_call.1} parent=5 // pred_check
        %p300 = pneg %p299
      $region38: #{tpu_custom_call.1} parent=5 // pred_check_branch
        %302 = sbr.rel (%p300) target = $region40
      $region39: #{tpu_custom_call.1} parent=5 // pred_region
        %s303 = ssub.s32 %s12, 2
        // Predicated region
        $region41: #{tpu_custom_call.1} parent=39 // pred_check
          %p304 = pneg %p119
        $region42: #{tpu_custom_call.1} parent=39 // pred_check_branch
          %306 = sbr.rel (%p304) target = $region44
        $region43: #{tpu_custom_call.1} parent=39 // pred_region
          %s307 = sand.u32 %s104, 1
          %s308 = scalar_lea.sflag [#allocation3], %s307
          %s309 = sand.u32 %s104, 1
          %s310 = scalar_lea.vmem [#allocation2], %s309
          %312 = dma.done %s308, 16
        $region44: #{tpu_custom_call.1} parent=39 // pred_fallthru
          _
      $region40: #{tpu_custom_call.1} parent=5 // pred_fallthru
        _
    $region6: #{tpu_custom_call.1} parent=1 // loop_footer
      %s16 = sadd.s32 1, %s12
    $region7: #{tpu_custom_call.1} parent=1 // loop_footer_branch
      %11 = sbr.rel target = $region3
    $region8: #{tpu_custom_call.1} parent=1 // loop_exit
      _
    %313 = vsyncpa [#allocation3], 1
    %s314 = scalar_lea.sflag [#allocation3], 1
    %315 = vsyncpa %s314, 1

</llo_original>
